<compile_context>
chip_gen: v7x
topology: tpu7x:2x2x1
jax: 0.10.0
libtpu: 0.0.40
codegen_flags: <defaults>
</compile_context>

<pallas_src>
import jax
import jax.numpy as jnp
from jax.experimental import pallas as pl
from jax.experimental.pallas import tpu as pltpu


_SUBLANE = 16  # round batch tiles to 16 rows: valid for both f32 (8,128) and bf16 (16,128)


def _round_up(x, m):
    return ((x + m - 1) // m) * m


def _choose_block(n, block_m, min_grid_steps=2):
    """Pick a batch tile: as large as block_m, but split moderate N into >=min_grid_steps
    grid steps so the 'parallel' axis can span both TensorCores on v7x."""
    full = _round_up(n, _SUBLANE)
    if full > block_m:
        return block_m
    if full <= _SUBLANE * min_grid_steps:      # too small to split usefully
        return full
    split = _round_up(-(-n // min_grid_steps), _SUBLANE)
    return max(_SUBLANE, min(full, split))


def _vmem_estimate_bytes(bm, k, r, resident_bytes):
    """Rough double-buffered working-set estimate (lane-padded input block included)."""
    per_step = (bm * _round_up(k, 128) * 4    # inp f32 block (stored at 128-lane granularity)
                + bm * r * 2                  # h in  (bf16)
                + bm * r * 4                  # c in  (f32)
                + bm * r * 2                  # h out (bf16)
                + bm * r * 4)                 # c out (f32)
    return 2 * per_step + 2 * resident_bytes


def edge_rnn_kernel(inp_ref, h_ref, c_ref,
                    w_enc_ref, b_enc_ref,
                    w_ih_ref, w_hh_ref, b_g_ref,
                    h_out_ref, c_out_ref):
    x = inp_ref[...]                      # (BM, K)  f32
    h_prev = h_ref[...]                   # (BM, R)  bf16
    c_prev = c_ref[...]                   # (BM, R)  f32
    K = x.shape[-1]
    R = h_out_ref.shape[-1]

    # ---- encoder_linear + ReLU ----
    if K <= 8:
        # K is tiny (2 here): VPU broadcast-FMA outer products instead of an MXU push/drain
        # for a (BM, 2) x (2, EMB) matmul. Revisit if input_size grows beyond ~8.
        w_enc = w_enc_ref[...]            # (K, EMB) f32
        e = x[:, 0:1] * w_enc[0:1, :] + b_enc_ref[...]
        for k in range(1, K):
            e = e + x[:, k:k + 1] * w_enc[k:k + 1, :]
    else:
        e = jnp.dot(x, w_enc_ref[...],
                    preferred_element_type=jnp.float32) + b_enc_ref[...]
    e = jnp.maximum(e, 0.0)
    # Dropout is identity here (inference / infer=True).

    # ---- LSTMCell gates: two bf16 MXU dots (no lane-misaligned concat), f32 accumulate ----
    gates = (jnp.dot(e.astype(jnp.bfloat16), w_ih_ref[...],
                     preferred_element_type=jnp.float32)
             + jnp.dot(h_prev, w_hh_ref[...],
                       preferred_element_type=jnp.float32)
             + b_g_ref[...])              # (BM, 4R) f32, gate order (i, f, o, g)

    # One contiguous sigmoid slab + one tanh slab (f32: safe on v5e's VPU/EUP).
    sig = jax.nn.sigmoid(gates[:, :3 * R])
    g_g = jnp.tanh(gates[:, 3 * R:])
    i_g = sig[:, 0 * R:1 * R]
    f_g = sig[:, 1 * R:2 * R]
    o_g = sig[:, 2 * R:3 * R]

    c_new = f_g * c_prev + i_g * g_g
    h_new = o_g * jnp.tanh(c_new)

    h_out_ref[...] = h_new.astype(h_out_ref.dtype)   # bf16
    c_out_ref[...] = c_new                           # f32


def human_human_edge_rnn(inp, h, c, packed, *, block_m=1024, min_grid_steps=2):
    """Batch-tiled pallas_call. h flows in/out as bf16; c stays f32."""
    N, K = inp.shape
    R = h.shape[-1]

    inp = inp.astype(jnp.float32)
    h = h.astype(jnp.bfloat16)
    c = c.astype(jnp.float32)

    bm = _choose_block(N, block_m, min_grid_steps)
    n_pad = _round_up(N, bm)
    if n_pad != N:
        pad = ((0, n_pad - N), (0, 0))
        inp = jnp.pad(inp, pad)
        h = jnp.pad(h, pad)
        c = jnp.pad(c, pad)
    grid = (n_pad // bm,)

    w_enc, b_enc = packed["w_enc"], packed["b_enc"]
    w_ih, w_hh, b_g = packed["w_ih"], packed["w_hh"], packed["b_gates"]

    batched = lambda cols: pl.BlockSpec((bm, cols), lambda i: (i, 0))
    # Constant index_map -> the block is fetched once and held resident across grid steps.
    resident = lambda a: pl.BlockSpec(a.shape, lambda i: (0, 0))

    resident_bytes = sum(int(a.size) * a.dtype.itemsize
                         for a in (w_enc, b_enc, w_ih, w_hh, b_g))
    est = _vmem_estimate_bytes(bm, K, R, resident_bytes)
    vmem_limit = None
    if est > 12 * 1024 * 1024:          # only needed for very large batch tiles (v5e: 16 MiB default)
        vmem_limit = min(est + (4 << 20), 48 << 20)

    h_new, c_new = pl.pallas_call(
        edge_rnn_kernel,
        out_shape=(jax.ShapeDtypeStruct((n_pad, R), jnp.bfloat16),
                   jax.ShapeDtypeStruct((n_pad, R), jnp.float32)),
        grid=grid,
        in_specs=[batched(K), batched(R), batched(R),
                  resident(w_enc), resident(b_enc),
                  resident(w_ih), resident(w_hh), resident(b_g)],
        out_specs=(pl.BlockSpec((bm, R), lambda i: (i, 0)),
                   pl.BlockSpec((bm, R), lambda i: (i, 0))),
        compiler_params=pltpu.CompilerParams(
            dimension_semantics=("parallel",),
            vmem_limit_bytes=vmem_limit),
    )(inp, h, c, w_enc, b_enc, w_ih, w_hh, b_g)

    # Padded tail rows hold bias-only garbage; slice them off (do NOT alias outputs onto
    # an unpadded cache without masking these rows).
    return h_new[:N], c_new[:N]


def init_params(key, input_size, embedding_size, rnn_size):
    """PyTorch-style init, weights pre-transposed to [in, out], gate order (i,f,g,o)."""
    ks = jax.random.split(key, 6)
    lin_b = 1.0 / jnp.sqrt(jnp.float32(input_size))
    lstm_b = 1.0 / jnp.sqrt(jnp.float32(rnn_size))
    u = lambda k, shape, b: jax.random.uniform(k, shape, jnp.float32, -b, b)
    return {
        "w_enc": u(ks[0], (input_size, embedding_size), lin_b),
        "b_enc": u(ks[1], (1, embedding_size), lin_b),
        "w_ih":  u(ks[2], (embedding_size, 4 * rnn_size), lstm_b),
        "b_ih":  u(ks[3], (1, 4 * rnn_size), lstm_b),
        "w_hh":  u(ks[4], (rnn_size, 4 * rnn_size), lstm_b),
        "b_hh":  u(ks[5], (1, 4 * rnn_size), lstm_b),
    }


def pack_params(p):
    """Permute gates (i,f,g,o)->(i,f,o,g), keep W_ih / W_hh separate (bf16), pre-sum biases."""
    R = p["w_hh"].shape[0]
    perm = jnp.concatenate([jnp.arange(0, 2 * R),          # i, f
                            jnp.arange(3 * R, 4 * R),      # o
                            jnp.arange(2 * R, 3 * R)])     # g
    return {
        "w_enc": p["w_enc"].astype(jnp.float32),
        "b_enc": p["b_enc"].astype(jnp.float32),
        "w_ih": p["w_ih"][:, perm].astype(jnp.bfloat16),
        "w_hh": p["w_hh"][:, perm].astype(jnp.bfloat16),
        "b_gates": (p["b_ih"][:, perm] + p["b_hh"][:, perm]).astype(jnp.float32),
    }


def reference_f32(inp, h, c, p):
    """Pure f32 reference matching the PyTorch module semantics (gate order i,f,g,o)."""
    e = jnp.maximum(inp @ p["w_enc"] + p["b_enc"], 0.0)
    gates = e @ p["w_ih"] + p["b_ih"] + h @ p["w_hh"] + p["b_hh"]
    R = h.shape[-1]
    i = jax.nn.sigmoid(gates[:, :R])
    f = jax.nn.sigmoid(gates[:, R:2 * R])
    g = jnp.tanh(gates[:, 2 * R:3 * R])
    o = jax.nn.sigmoid(gates[:, 3 * R:])
    c_new = f * c + i * g
    return o * jnp.tanh(c_new), c_new


def reference_packed(inp, h, c, packed):
    """Reference mimicking the kernel's exact numerical path (bf16 h + two bf16 dots)."""
    w_enc, b_enc = packed["w_enc"], packed["b_enc"]
    K = inp.shape[-1]
    e = inp[:, 0:1] * w_enc[0:1, :] + b_enc
    for k in range(1, K):
        e = e + inp[:, k:k + 1] * w_enc[k:k + 1, :]
    e = jnp.maximum(e, 0.0)
    gates = (jnp.dot(e.astype(jnp.bfloat16), packed["w_ih"],
                     preferred_element_type=jnp.float32)
             + jnp.dot(h.astype(jnp.bfloat16), packed["w_hh"],
                       preferred_element_type=jnp.float32)
             + packed["b_gates"])
    R = h.shape[-1]
    sig = jax.nn.sigmoid(gates[:, :3 * R])
    g = jnp.tanh(gates[:, 3 * R:])
    i, f, o = sig[:, :R], sig[:, R:2 * R], sig[:, 2 * R:3 * R]
    c_new = f * c + i * g
    h_new = (o * jnp.tanh(c_new)).astype(jnp.bfloat16)
    return h_new, c_new


if __name__ == "__main__":
    # args.human_human_edge_input_size=2, embedding_size=64, rnn_size=128
    N, INPUT, EMB, RNN = 8, 2, 64, 128

    key = jax.random.PRNGKey(0)
    k_inp, k_h, k_c, k_p = jax.random.split(key, 4)
    inp = jax.random.normal(k_inp, (N, INPUT), jnp.float32)
    h = jax.random.normal(k_h, (N, RNN), jnp.float32)
    c = jax.random.normal(k_c, (N, RNN), jnp.float32)

    params = init_params(k_p, INPUT, EMB, RNN)
    packed = pack_params(params)

    h_new, c_new = human_human_edge_rnn(inp, h, c, packed)
    jax.block_until_ready((h_new, c_new))

    h_new_f32 = h_new.astype(jnp.float32)

    # Tight check against a reference that follows the kernel's exact bf16 path.
    h_pk, c_pk = reference_packed(inp, h, c, packed)
    assert jnp.allclose(h_new_f32, h_pk.astype(jnp.float32), atol=2e-2), \
        "h mismatch vs packed reference"
    assert jnp.allclose(c_new, c_pk, atol=2e-3), "c mismatch vs packed reference"

    # Looser check against the pure-f32 PyTorch-semantics reference (bf16 weight/h rounding).
    h_ref, c_ref = reference_f32(inp, h, c, params)
    assert jnp.allclose(h_new_f32, h_ref, atol=1e-1), "h mismatch vs f32 reference"
    assert jnp.allclose(c_new, c_ref, atol=1e-1), "c mismatch vs f32 reference"

    print("KERNEL_OK")
</pallas_src>

<mosaic_0001>
module attributes {stable_mosaic.version = 11 : i64} {
  func.func @edge_rnn_kernel(%arg0: i32, %arg1: memref<16x2xf32, #tpu.memory_space<vmem>>, %arg2: memref<16x128xbf16, #tpu.memory_space<vmem>>, %arg3: memref<16x128xf32, #tpu.memory_space<vmem>>, %arg4: memref<2x64xf32, #tpu.memory_space<vmem>>, %arg5: memref<1x64xf32, #tpu.memory_space<vmem>>, %arg6: memref<64x512xbf16, #tpu.memory_space<vmem>>, %arg7: memref<128x512xbf16, #tpu.memory_space<vmem>>, %arg8: memref<1x512xf32, #tpu.memory_space<vmem>>, %arg9: memref<16x128xbf16, #tpu.memory_space<vmem>>, %arg10: memref<16x128xf32, #tpu.memory_space<vmem>>) attributes {dimension_semantics = [#tpu.dimension_semantics<parallel>], iteration_bounds = array<i64: 1>, scalar_prefetch = 0 : i64, scratch_operands = 0 : i64, tpu.core_type = #tpu.core_type<tc>, window_params = [{transform_indices = @transform_0, window_bounds = array<i64: 16, 2>}, {transform_indices = @transform_1, window_bounds = array<i64: 16, 128>}, {transform_indices = @transform_2, window_bounds = array<i64: 16, 128>}, {pipeline_mode = #tpu.pipeline_mode<synchronous>, transform_indices = @transform_3, window_bounds = array<i64: 2, 64>}, {pipeline_mode = #tpu.pipeline_mode<synchronous>, transform_indices = @transform_4, window_bounds = array<i64: 1, 64>}, {pipeline_mode = #tpu.pipeline_mode<synchronous>, transform_indices = @transform_5, window_bounds = array<i64: 64, 512>}, {pipeline_mode = #tpu.pipeline_mode<synchronous>, transform_indices = @transform_6, window_bounds = array<i64: 128, 512>}, {pipeline_mode = #tpu.pipeline_mode<synchronous>, transform_indices = @transform_7, window_bounds = array<i64: 1, 512>}, {transform_indices = @transform_8, window_bounds = array<i64: 16, 128>}, {transform_indices = @transform_9, window_bounds = array<i64: 16, 128>}]} {
    %c0 = arith.constant 0 : index
    %c0_0 = arith.constant 0 : index
    %0 = vector.load %arg1[%c0, %c0_0] : memref<16x2xf32, #tpu.memory_space<vmem>>, vector<16x2xf32>
    %c0_1 = arith.constant 0 : index
    %c0_2 = arith.constant 0 : index
    %1 = vector.load %arg2[%c0_1, %c0_2] : memref<16x128xbf16, #tpu.memory_space<vmem>>, vector<16x128xbf16>
    %c0_3 = arith.constant 0 : index
    %c0_4 = arith.constant 0 : index
    %2 = vector.load %arg3[%c0_3, %c0_4] : memref<16x128xf32, #tpu.memory_space<vmem>>, vector<16x128xf32>
    %c0_5 = arith.constant 0 : index
    %c0_6 = arith.constant 0 : index
    %3 = vector.load %arg4[%c0_5, %c0_6] : memref<2x64xf32, #tpu.memory_space<vmem>>, vector<2x64xf32>
    %4 = vector.extract_strided_slice %0 {offsets = [0, 0], sizes = [16, 1], strides = [1, 1]} : vector<16x2xf32> to vector<16x1xf32>
    %5 = vector.extract_strided_slice %3 {offsets = [0, 0], sizes = [1, 64], strides = [1, 1]} : vector<2x64xf32> to vector<1x64xf32>
    %6 = vector.broadcast %4 : vector<16x1xf32> to vector<16x64xf32>
    %7 = vector.broadcast %5 : vector<1x64xf32> to vector<16x64xf32>
    %8 = arith.mulf %6, %7 : vector<16x64xf32>
    %c0_7 = arith.constant 0 : index
    %c0_8 = arith.constant 0 : index
    %9 = vector.load %arg5[%c0_7, %c0_8] : memref<1x64xf32, #tpu.memory_space<vmem>>, vector<1x64xf32>
    %10 = vector.broadcast %9 : vector<1x64xf32> to vector<16x64xf32>
    %11 = arith.addf %8, %10 : vector<16x64xf32>
    %12 = vector.extract_strided_slice %0 {offsets = [0, 1], sizes = [16, 1], strides = [1, 1]} : vector<16x2xf32> to vector<16x1xf32>
    %13 = vector.extract_strided_slice %3 {offsets = [1, 0], sizes = [1, 64], strides = [1, 1]} : vector<2x64xf32> to vector<1x64xf32>
    %14 = vector.broadcast %12 : vector<16x1xf32> to vector<16x64xf32>
    %15 = vector.broadcast %13 : vector<1x64xf32> to vector<16x64xf32>
    %16 = arith.mulf %14, %15 : vector<16x64xf32>
    %17 = arith.addf %11, %16 : vector<16x64xf32>
    %cst = arith.constant 0.000000e+00 : f32
    %18 = vector.broadcast %cst : f32 to vector<16x64xf32>
    %19 = arith.maximumf %17, %18 : vector<16x64xf32>
    %20 = arith.truncf %19 : vector<16x64xf32> to vector<16x64xbf16>
    %c0_9 = arith.constant 0 : index
    %c0_10 = arith.constant 0 : index
    %21 = vector.load %arg6[%c0_9, %c0_10] : memref<64x512xbf16, #tpu.memory_space<vmem>>, vector<64x512xbf16>
    %cst_11 = arith.constant dense<0.000000e+00> : vector<16x512xf32>
    %22 = tpu.matmul %20, %21, %cst_11 {dimension_numbers = #tpu.dot_dimension_numbers<[1], [0], [0], [1], [0, 0, 1, 1], [], []>} : vector<16x64xbf16>, vector<64x512xbf16>, vector<16x512xf32> -> vector<16x512xf32>
    %c0_12 = arith.constant 0 : index
    %c0_13 = arith.constant 0 : index
    %23 = vector.load %arg7[%c0_12, %c0_13] : memref<128x512xbf16, #tpu.memory_space<vmem>>, vector<128x512xbf16>
    %cst_14 = arith.constant dense<0.000000e+00> : vector<16x512xf32>
    %24 = tpu.matmul %1, %23, %cst_14 {dimension_numbers = #tpu.dot_dimension_numbers<[1], [0], [0], [1], [0, 0, 1, 1], [], []>} : vector<16x128xbf16>, vector<128x512xbf16>, vector<16x512xf32> -> vector<16x512xf32>
    %25 = arith.addf %22, %24 : vector<16x512xf32>
    %c0_15 = arith.constant 0 : index
    %c0_16 = arith.constant 0 : index
    %26 = vector.load %arg8[%c0_15, %c0_16] : memref<1x512xf32, #tpu.memory_space<vmem>>, vector<1x512xf32>
    %27 = vector.broadcast %26 : vector<1x512xf32> to vector<16x512xf32>
    %28 = arith.addf %25, %27 : vector<16x512xf32>
    %29 = vector.extract_strided_slice %28 {offsets = [0, 0], sizes = [16, 384], strides = [1, 1]} : vector<16x512xf32> to vector<16x384xf32>
    %30 = arith.negf %29 : vector<16x384xf32>
    %31 = math.exp %30 : vector<16x384xf32>
    %cst_17 = arith.constant 1.000000e+00 : f32
    %32 = vector.broadcast %cst_17 : f32 to vector<16x384xf32>
    %33 = arith.addf %32, %31 : vector<16x384xf32>
    %34 = arith.divf %32, %33 : vector<16x384xf32>
    %35 = vector.extract_strided_slice %28 {offsets = [0, 384], sizes = [16, 128], strides = [1, 1]} : vector<16x512xf32> to vector<16x128xf32>
    %36 = math.tanh %35 : vector<16x128xf32>
    %37 = vector.extract_strided_slice %34 {offsets = [0, 0], sizes = [16, 128], strides = [1, 1]} : vector<16x384xf32> to vector<16x128xf32>
    %38 = vector.extract_strided_slice %34 {offsets = [0, 128], sizes = [16, 128], strides = [1, 1]} : vector<16x384xf32> to vector<16x128xf32>
    %39 = vector.extract_strided_slice %34 {offsets = [0, 256], sizes = [16, 128], strides = [1, 1]} : vector<16x384xf32> to vector<16x128xf32>
    %40 = arith.mulf %38, %2 : vector<16x128xf32>
    %41 = arith.mulf %37, %36 : vector<16x128xf32>
    %42 = arith.addf %40, %41 : vector<16x128xf32>
    %43 = math.tanh %42 : vector<16x128xf32>
    %44 = arith.mulf %39, %43 : vector<16x128xf32>
    %45 = arith.truncf %44 : vector<16x128xf32> to vector<16x128xbf16>
    %c0_18 = arith.constant 0 : index
    %c0_19 = arith.constant 0 : index
    %46 = vector.load %arg9[%c0_18, %c0_19] : memref<16x128xbf16, #tpu.memory_space<vmem>>, vector<16x128xbf16>
    tpu.vector_store %arg9[%c0_18, %c0_19], %45 {strides = array<i32>} : memref<16x128xbf16, #tpu.memory_space<vmem>>, vector<16x128xbf16>,
    %c0_20 = arith.constant 0 : index
    %c0_21 = arith.constant 0 : index
    %47 = vector.load %arg10[%c0_20, %c0_21] : memref<16x128xf32, #tpu.memory_space<vmem>>, vector<16x128xf32>
    tpu.vector_store %arg10[%c0_20, %c0_21], %42 {strides = array<i32>} : memref<16x128xf32, #tpu.memory_space<vmem>>, vector<16x128xf32>,
    return
  }
  func.func @transform_0(%arg0: i32) -> (i32, i32) {
    %c0_i32 = arith.constant 0 : i32
    %c0_i32_0 = arith.constant 0 : i32
    return %arg0, %c0_i32 : i32, i32
  }
  func.func @transform_1(%arg0: i32) -> (i32, i32) {
    %c0_i32 = arith.constant 0 : i32
    %c0_i32_0 = arith.constant 0 : i32
    return %arg0, %c0_i32 : i32, i32
  }
  func.func @transform_2(%arg0: i32) -> (i32, i32) {
    %c0_i32 = arith.constant 0 : i32
    %c0_i32_0 = arith.constant 0 : i32
    return %arg0, %c0_i32 : i32, i32
  }
  func.func @transform_3(%arg0: i32) -> (i32, i32) {
    %c0_i32 = arith.constant 0 : i32
    %c0_i32_0 = arith.constant 0 : i32
    %c0_i32_1 = arith.constant 0 : i32
    return %c0_i32, %c0_i32_0 : i32, i32
  }
  func.func @transform_4(%arg0: i32) -> (i32, i32) {
    %c0_i32 = arith.constant 0 : i32
    %c0_i32_0 = arith.constant 0 : i32
    %c0_i32_1 = arith.constant 0 : i32
    return %c0_i32, %c0_i32_0 : i32, i32
  }
  func.func @transform_5(%arg0: i32) -> (i32, i32) {
    %c0_i32 = arith.constant 0 : i32
    %c0_i32_0 = arith.constant 0 : i32
    %c0_i32_1 = arith.constant 0 : i32
    return %c0_i32, %c0_i32_0 : i32, i32
  }
  func.func @transform_6(%arg0: i32) -> (i32, i32) {
    %c0_i32 = arith.constant 0 : i32
    %c0_i32_0 = arith.constant 0 : i32
    %c0_i32_1 = arith.constant 0 : i32
    return %c0_i32, %c0_i32_0 : i32, i32
  }
  func.func @transform_7(%arg0: i32) -> (i32, i32) {
    %c0_i32 = arith.constant 0 : i32
    %c0_i32_0 = arith.constant 0 : i32
    %c0_i32_1 = arith.constant 0 : i32
    return %c0_i32, %c0_i32_0 : i32, i32
  }
  func.func @transform_8(%arg0: i32) -> (i32, i32) {
    %c0_i32 = arith.constant 0 : i32
    %c0_i32_0 = arith.constant 0 : i32
    return %arg0, %c0_i32 : i32, i32
  }
  func.func @transform_9(%arg0: i32) -> (i32, i32) {
    %c0_i32 = arith.constant 0 : i32
    %c0_i32_0 = arith.constant 0 : i32
    return %arg0, %c0_i32 : i32, i32
  }
}

</mosaic_0001>

<llo_original>
// kernel: tpu_custom_call.1
$region0: #{tpu_custom_call.1}
  #allocation0 [shape = 'u32[]', space=smem, size = 0x4, offset = 0x4, fixed_abs, tag = 'smem constant byte address 0x4 - core index']
  #allocation1 [shape = 'u32[144,128]{1,0:T(1,128)}', space=vmem, size = 0x12000, scoped, tag = 'internal scratch']
  %s0 = inlined_call_operand.vmem [shape: f32[16,2], index: 0, kind: input, shape index: {}]
  %s1 = inlined_call_operand.vmem [shape: bf16[16,128], index: 1, kind: input, shape index: {}]
  %s2 = inlined_call_operand.vmem [shape: f32[16,128], index: 2, kind: input, shape index: {}]
  %s3 = inlined_call_operand.hbm [shape: f32[2,64], index: 3, kind: input, shape index: {}]
  %s4 = inlined_call_operand.vmem [shape: f32[1,64], index: 4, kind: input, shape index: {}]
  %s5 = inlined_call_operand.hbm [shape: bf16[64,512], index: 5, kind: input, shape index: {}]
  %s6 = inlined_call_operand.hbm [shape: bf16[128,512], index: 6, kind: input, shape index: {}]
  %s7 = inlined_call_operand.vmem [shape: f32[1,512], index: 7, kind: input, shape index: {}]
  %s8 = inlined_call_operand.hbm [shape: bf16[16,128], index: 8, kind: output, shape index: {0}]
  %s9 = inlined_call_operand.hbm [shape: f32[16,128], index: 9, kind: output, shape index: {1}]
  %10 = xla_tuple %s8, %s9
  %s11 = sld [smem:[#allocation0]]
  $region62: #{tpu_custom_call.1} parent=0
    _
  %s13 = ssub.s32 1, %s11
  %s14 = scalar_select 0, %s13, %s11
  $region1: #{tpu_custom_call.1} parent=0
    #allocation2 [shape = 'u8[1024]{0}', space=vmem, size = 0x400, scoped, tag = 'input window, operand 3, single buffered']
    #allocation3 [shape = 's32[1]{0}', space=sflag, size = 0x4, scoped, tag = 'scoped memory for tpu_custom_call.1']
    #allocation4 [shape = 's32[1]{0}', space=sflag, size = 0x4, scoped, tag = 'scoped memory for tpu_custom_call.1']
    #allocation5 [shape = 'u8[65536]{0}', space=vmem, size = 0x10000, scoped, tag = 'input window, operand 5, single buffered']
    #allocation6 [shape = 's32[1]{0}', space=sflag, size = 0x4, scoped, tag = 'scoped memory for tpu_custom_call.1']
    #allocation7 [shape = 'u8[131072]{0}', space=vmem, size = 0x20000, scoped, tag = 'input window, operand 6, single buffered']
    #allocation8 [shape = 'u8[4096]{0}', space=vmem, size = 0x1000, scoped, tag = 'output window, operand 0, single buffered']
    #allocation9 [shape = 'u8[8192]{0}', space=vmem, size = 0x2000, scoped, tag = 'output window, operand 1, single buffered']
    #allocation10 [shape = 's32[1]{0}', space=sflag, size = 0x4, scoped, tag = 'scoped memory for tpu_custom_call.1']
    %15 = vsyncpa [#allocation3], 0
    %16 = vsyncpa [#allocation6], 0
    %17 = vsyncpa [#allocation4], 0
    %18 = vsyncpa [#allocation10], 0
    // Predicated region
    $region2: #{tpu_custom_call.1} parent=1 // pred_check
      _
    $region3: #{tpu_custom_call.1} parent=1 // pred_check_branch
      %20 = sbr.rel (0) target = $region5
    $region4: #{tpu_custom_call.1} parent=1 // pred_region
      _
    $region5: #{tpu_custom_call.1} parent=1 // pred_fallthru
      _
    // Predicated region
    $region6: #{tpu_custom_call.1} parent=1 // pred_check
      _
    $region7: #{tpu_custom_call.1} parent=1 // pred_check_branch
      %22 = sbr.rel (0) target = $region9
    $region8: #{tpu_custom_call.1} parent=1 // pred_region
      _
    $region9: #{tpu_custom_call.1} parent=1 // pred_fallthru
      _
    // Predicated region
    $region10: #{tpu_custom_call.1} parent=1 // pred_check
      _
    $region11: #{tpu_custom_call.1} parent=1 // pred_check_branch
      %24 = sbr.rel (0) target = $region13
    $region12: #{tpu_custom_call.1} parent=1 // pred_region
      _
    $region13: #{tpu_custom_call.1} parent=1 // pred_fallthru
      _
    // Predicated region
    $region14: #{tpu_custom_call.1} parent=1 // pred_check
      _
    $region15: #{tpu_custom_call.1} parent=1 // pred_check_branch
      %26 = sbr.rel (0) target = $region17
    $region16: #{tpu_custom_call.1} parent=1 // pred_region
      %s28 = ssub.s32 32, 32
      %29 = vsyncadd [#allocation3], %s28
      %s31 = sshll.u32 [#allocation2], 4
      %s32 = int_to_ptr.vmem [resolvable:$true] %s31
      %34 = dma.hbm_to_vmem [thread:$0]  %s3, 32, %s32, [#allocation3]
    $region17: #{tpu_custom_call.1} parent=1 // pred_fallthru
      _
    // Predicated region
    $region18: #{tpu_custom_call.1} parent=1 // pred_check
      _
    $region19: #{tpu_custom_call.1} parent=1 // pred_check_branch
      %36 = sbr.rel (0) target = $region21
    $region20: #{tpu_custom_call.1} parent=1 // pred_region
      _
    $region21: #{tpu_custom_call.1} parent=1 // pred_fallthru
      _
    // Predicated region
    $region22: #{tpu_custom_call.1} parent=1 // pred_check
      _
    $region23: #{tpu_custom_call.1} parent=1 // pred_check_branch
      %38 = sbr.rel (0) target = $region25
    $region24: #{tpu_custom_call.1} parent=1 // pred_region
      %s40 = ssub.s32 2048, 2048
      %41 = vsyncadd [#allocation6], %s40
      %s42 = sshll.u32 [#allocation5], 4
      %s43 = int_to_ptr.vmem [resolvable:$true] %s42
      %48 = dma.hbm_to_vmem [thread:$0]  %s5, 2048, %s43, [#allocation6], 256, 256, 16
    $region25: #{tpu_custom_call.1} parent=1 // pred_fallthru
      _
    // Predicated region
    $region26: #{tpu_custom_call.1} parent=1 // pred_check
      _
    $region27: #{tpu_custom_call.1} parent=1 // pred_check_branch
      %50 = sbr.rel (0) target = $region29
    $region28: #{tpu_custom_call.1} parent=1 // pred_region
      %s52 = ssub.s32 4096, 4096
      %53 = vsyncadd [#allocation6], %s52
      %s54 = sshll.u32 [#allocation7], 4
      %s55 = int_to_ptr.vmem [resolvable:$true] %s54
      %60 = dma.hbm_to_vmem [thread:$0]  %s6, 4096, %s55, [#allocation6], 256, 256, 16
    $region29: #{tpu_custom_call.1} parent=1 // pred_fallthru
      _
    // Predicated region
    $region30: #{tpu_custom_call.1} parent=1 // pred_check
      _
    $region31: #{tpu_custom_call.1} parent=1 // pred_check_branch
      %62 = sbr.rel (0) target = $region33
    $region32: #{tpu_custom_call.1} parent=1 // pred_region
      _
    $region33: #{tpu_custom_call.1} parent=1 // pred_fallthru
      _
    // Predicated region
    $region34: #{tpu_custom_call.1} parent=1 // pred_check
      _
    $region35: #{tpu_custom_call.1} parent=1 // pred_check_branch
      %64 = sbr.rel (0) target = $region37
    $region36: #{tpu_custom_call.1} parent=1 // pred_region
      %65 = dma.done [#allocation3], 32
    $region37: #{tpu_custom_call.1} parent=1 // pred_fallthru
      _
    // Predicated region
    $region38: #{tpu_custom_call.1} parent=1 // pred_check
      _
    $region39: #{tpu_custom_call.1} parent=1 // pred_check_branch
      %67 = sbr.rel (0) target = $region41
    $region40: #{tpu_custom_call.1} parent=1 // pred_region
      %68 = dma.done [#allocation6], 2048
    $region41: #{tpu_custom_call.1} parent=1 // pred_fallthru
      _
    // Predicated region
    $region42: #{tpu_custom_call.1} parent=1 // pred_check
      _
    $region43: #{tpu_custom_call.1} parent=1 // pred_check_branch
      %70 = sbr.rel (0) target = $region45
    $region44: #{tpu_custom_call.1} parent=1 // pred_region
      %71 = dma.done [#allocation6], 4096
    $region45: #{tpu_custom_call.1} parent=1 // pred_fallthru
      _
    %v73 = vld [vmem:[%s0] sm:$0xff]
    %v74 = vld [vmem:[%s0 + $0x8] sm:$0xff]
    %v75 = vld [vmem:[%s1] sm:$0xf]
    %v76 = vld [vmem:[%s1 + $0x4] sm:$0xf]
    %v77 = vld [vmem:[%s2] sm:$0xff]
    %v78 = vld [vmem:[%s2 + $0x8] sm:$0xff]
    %v79 = vld [vmem:[#allocation2] sm:$0x3]
    %81 = vset.pattern.permute.xlu0 0
    %82 = vperm.xlu0 %81, %v73
    %v83 = vpop.permute.xlu0 %82
    %86 = vset.pattern.permute.xlu0 0
    %87 = vperm.xlu0 %86, %v74
    %v88 = vpop.permute.xlu0 %87
    %v90 = vlaneseq
    %v91 = vshrl.u32 %v90, 7
    %v92 = vsub.s32 0, %v91
    %v93 = vrot.slane %v79, %v92
    %v94 = vmul.f32 %v83, %v93
    %v95 = vmul.f32 %v88, %v93
    %v96 = vld [vmem:[%s4] sm:$0x1]
    %v98 = vlaneseq
    %v99 = vshrl.u32 %v98, 7
    %v100 = vsub.s32 0, %v99
    %v101 = vrot.slane %v96, %v100
    %v103 = vadd.f32 %v94, %v101
    %v104 = vadd.f32 %v95, %v101
    %105 = vset.pattern.permute.xlu0 1
    %106 = vperm.xlu0 %105, %v73
    %v107 = vpop.permute.xlu0 %106
    %109 = vset.pattern.permute.xlu0 1
    %110 = vperm.xlu0 %109, %v74
    %v111 = vpop.permute.xlu0 %110
    %v113 = vlaneseq
    %v114 = vshrl.u32 %v113, 7
    %v115 = vsub.s32 1, %v114
    %v116 = vrot.slane %v79, %v115
    %v117 = vmul.f32 %v107, %v116
    %v118 = vmul.f32 %v111, %v116
    %v119 = vadd.f32 %v103, %v117
    %v120 = vadd.f32 %v104, %v118
    %v121 = vmax.f32 %v119, 0.0
    %v122 = vmax.f32 %v120, 0.0
    %v123 = vpack.c.bf16 %v122, %v121
    %v124 = vld [vmem:[#allocation5] sm:$0xff]
    %v125 = vld [vmem:[#allocation5 + $0x8] sm:$0xff]
    %v126 = vld [vmem:[#allocation5 + $0x10] sm:$0xff]
    %v127 = vld [vmem:[#allocation5 + $0x18] sm:$0xff]
    %v128 = vld [vmem:[#allocation5 + $0x20] sm:$0xff]
    %v129 = vld [vmem:[#allocation5 + $0x28] sm:$0xff]
    %v130 = vld [vmem:[#allocation5 + $0x30] sm:$0xff]
    %v131 = vld [vmem:[#allocation5 + $0x38] sm:$0xff]
    %v132 = vld [vmem:[#allocation5 + $0x40] sm:$0xff]
    %v133 = vld [vmem:[#allocation5 + $0x48] sm:$0xff]
    %v134 = vld [vmem:[#allocation5 + $0x50] sm:$0xff]
    %v135 = vld [vmem:[#allocation5 + $0x58] sm:$0xff]
    %v136 = vld [vmem:[#allocation5 + $0x60] sm:$0xff]
    %v137 = vld [vmem:[#allocation5 + $0x68] sm:$0xff]
    %v138 = vld [vmem:[#allocation5 + $0x70] sm:$0xff]
    %v139 = vld [vmem:[#allocation5 + $0x78] sm:$0xff]
    %v140 = vld [vmem:[#allocation7] sm:$0xff]
    %v141 = vld [vmem:[#allocation7 + $0x8] sm:$0xff]
    %v142 = vld [vmem:[#allocation7 + $0x10] sm:$0xff]
    %v143 = vld [vmem:[#allocation7 + $0x18] sm:$0xff]
    %v144 = vld [vmem:[#allocation7 + $0x20] sm:$0xff]
    %v145 = vld [vmem:[#allocation7 + $0x28] sm:$0xff]
    %v146 = vld [vmem:[#allocation7 + $0x30] sm:$0xff]
    %v147 = vld [vmem:[#allocation7 + $0x38] sm:$0xff]
    %v148 = vld [vmem:[#allocation7 + $0x40] sm:$0xff]
    %v149 = vld [vmem:[#allocation7 + $0x48] sm:$0xff]
    %v150 = vld [vmem:[#allocation7 + $0x50] sm:$0xff]
    %v151 = vld [vmem:[#allocation7 + $0x58] sm:$0xff]
    %v152 = vld [vmem:[#allocation7 + $0x60] sm:$0xff]
    %v153 = vld [vmem:[#allocation7 + $0x68] sm:$0xff]
    %v154 = vld [vmem:[#allocation7 + $0x70] sm:$0xff]
    %v155 = vld [vmem:[#allocation7 + $0x78] sm:$0xff]
    %v156 = vld [vmem:[#allocation7 + $0x80] sm:$0xff]
    %v157 = vld [vmem:[#allocation7 + $0x88] sm:$0xff]
    %v158 = vld [vmem:[#allocation7 + $0x90] sm:$0xff]
    %v159 = vld [vmem:[#allocation7 + $0x98] sm:$0xff]
    %v160 = vld [vmem:[#allocation7 + $0xa0] sm:$0xff]
    %v161 = vld [vmem:[#allocation7 + $0xa8] sm:$0xff]
    %v162 = vld [vmem:[#allocation7 + $0xb0] sm:$0xff]
    %v163 = vld [vmem:[#allocation7 + $0xb8] sm:$0xff]
    %v164 = vld [vmem:[#allocation7 + $0xc0] sm:$0xff]
    %v165 = vld [vmem:[#allocation7 + $0xc8] sm:$0xff]
    %v166 = vld [vmem:[#allocation7 + $0xd0] sm:$0xff]
    %v167 = vld [vmem:[#allocation7 + $0xd8] sm:$0xff]
    %v168 = vld [vmem:[#allocation7 + $0xe0] sm:$0xff]
    %v169 = vld [vmem:[#allocation7 + $0xe8] sm:$0xff]
    %v170 = vld [vmem:[#allocation7 + $0xf0] sm:$0xff]
    %v171 = vld [vmem:[#allocation7 + $0xf8] sm:$0xff]
    %v174 = vunpack.c.l.b16 %v75
    %v175 = vunpack.c.l.b16 %v76
    %v176 = vpack.c.b16 %v175, %v174
    %v210 = vunpack.c.l.b16 %v140
    %v211 = vunpack.c.h.b16 %v140
    %v212 = vunpack.c.l.b16 %v141
    %v213 = vunpack.c.h.b16 %v141
    %v214 = vunpack.c.l.b16 %v142
    %v215 = vunpack.c.h.b16 %v142
    %v216 = vunpack.c.l.b16 %v143
    %v217 = vunpack.c.h.b16 %v143
    %v218 = vunpack.c.l.b16 %v144
    %v219 = vunpack.c.h.b16 %v144
    %v220 = vunpack.c.l.b16 %v145
    %v221 = vunpack.c.h.b16 %v145
    %v222 = vunpack.c.l.b16 %v146
    %v223 = vunpack.c.h.b16 %v146
    %v224 = vunpack.c.l.b16 %v147
    %v225 = vunpack.c.h.b16 %v147
    %v226 = vunpack.c.l.b16 %v148
    %v227 = vunpack.c.h.b16 %v148
    %v228 = vunpack.c.l.b16 %v149
    %v229 = vunpack.c.h.b16 %v149
    %v230 = vunpack.c.l.b16 %v150
    %v231 = vunpack.c.h.b16 %v150
    %v232 = vunpack.c.l.b16 %v151
    %v233 = vunpack.c.h.b16 %v151
    %v234 = vunpack.c.l.b16 %v152
    %v235 = vunpack.c.h.b16 %v152
    %v236 = vunpack.c.l.b16 %v153
    %v237 = vunpack.c.h.b16 %v153
    %v238 = vunpack.c.l.b16 %v154
    %v239 = vunpack.c.h.b16 %v154
    %v240 = vunpack.c.l.b16 %v155
    %v241 = vunpack.c.h.b16 %v155
    %v242 = vunpack.c.l.b16 %v156
    %v243 = vunpack.c.h.b16 %v156
    %v244 = vunpack.c.l.b16 %v157
    %v245 = vunpack.c.h.b16 %v157
    %v246 = vunpack.c.l.b16 %v158
    %v247 = vunpack.c.h.b16 %v158
    %v248 = vunpack.c.l.b16 %v159
    %v249 = vunpack.c.h.b16 %v159
    %v250 = vunpack.c.l.b16 %v160
    %v251 = vunpack.c.h.b16 %v160
    %v252 = vunpack.c.l.b16 %v161
    %v253 = vunpack.c.h.b16 %v161
    %v254 = vunpack.c.l.b16 %v162
    %v255 = vunpack.c.h.b16 %v162
    %v256 = vunpack.c.l.b16 %v163
    %v257 = vunpack.c.h.b16 %v163
    %v258 = vunpack.c.l.b16 %v164
    %v259 = vunpack.c.h.b16 %v164
    %v260 = vunpack.c.l.b16 %v165
    %v261 = vunpack.c.h.b16 %v165
    %v262 = vunpack.c.l.b16 %v166
    %v263 = vunpack.c.h.b16 %v166
    %v264 = vunpack.c.l.b16 %v167
    %v265 = vunpack.c.h.b16 %v167
    %v266 = vunpack.c.l.b16 %v168
    %v267 = vunpack.c.h.b16 %v168
    %v268 = vunpack.c.l.b16 %v169
    %v269 = vunpack.c.h.b16 %v169
    %v270 = vunpack.c.l.b16 %v170
    %v271 = vunpack.c.h.b16 %v170
    %v272 = vunpack.c.l.b16 %v171
    %v273 = vunpack.c.h.b16 %v171
    %v274 = vpack.c.b16 %v214, %v210
    %v275 = vpack.c.b16 %v215, %v211
    %v276 = vpack.c.b16 %v216, %v212
    %v277 = vpack.c.b16 %v217, %v213
    %v278 = vpack.c.b16 %v222, %v218
    %v279 = vpack.c.b16 %v223, %v219
    %v280 = vpack.c.b16 %v224, %v220
    %v281 = vpack.c.b16 %v225, %v221
    %v282 = vpack.c.b16 %v230, %v226
    %v283 = vpack.c.b16 %v231, %v227
    %v284 = vpack.c.b16 %v232, %v228
    %v285 = vpack.c.b16 %v233, %v229
    %v286 = vpack.c.b16 %v238, %v234
    %v287 = vpack.c.b16 %v239, %v235
    %v288 = vpack.c.b16 %v240, %v236
    %v289 = vpack.c.b16 %v241, %v237
    %v290 = vpack.c.b16 %v246, %v242
    %v291 = vpack.c.b16 %v247, %v243
    %v292 = vpack.c.b16 %v248, %v244
    %v293 = vpack.c.b16 %v249, %v245
    %v294 = vpack.c.b16 %v254, %v250
    %v295 = vpack.c.b16 %v255, %v251
    %v296 = vpack.c.b16 %v256, %v252
    %v297 = vpack.c.b16 %v257, %v253
    %v298 = vpack.c.b16 %v262, %v258
    %v299 = vpack.c.b16 %v263, %v259
    %v300 = vpack.c.b16 %v264, %v260
    %v301 = vpack.c.b16 %v265, %v261
    %v302 = vpack.c.b16 %v270, %v266
    %v303 = vpack.c.b16 %v271, %v267
    %v304 = vpack.c.b16 %v272, %v268
    %v305 = vpack.c.b16 %v273, %v269
    %338 = vmatprep.subr.bf16.mxu0 %v275
    %339 = vmatpush1.bf16.msra.mxu0 %v274
    %340 = vmatprep.subr.bf16.mxu0 %v279
    %341 = vmatpush1.bf16.msra.mxu0 %v278
    %342 = vmatprep.subr.bf16.mxu0 %v283
    %343 = vmatpush1.bf16.msra.mxu0 %v282
    %344 = vmatprep.subr.bf16.mxu0 %v287
    %345 = vmatpush1.bf16.msra.mxu0 %v286
    %346 = vmatprep.subr.bf16.mxu0 %v291
    %347 = vmatpush1.bf16.msra.mxu0 %v290
    %348 = vmatprep.subr.bf16.mxu0 %v295
    %349 = vmatpush1.bf16.msra.mxu0 %v294
    %350 = vmatprep.subr.bf16.mxu0 %v299
    %351 = vmatpush1.bf16.msra.mxu0 %v298
    %352 = vmatprep.subr.bf16.mxu0 %v303
    %353 = vmatpush1.bf16.msra.mxu0 %v302
    %354 = vmatprep.subr.bf16.mxu0 0
    %355 = vmatpush1.bf16.msra.mxu0 0
    %356 = vmatprep.subr.bf16.mxu0 0
    %357 = vmatpush1.bf16.msra.mxu0 0
    %358 = vmatprep.subr.bf16.mxu0 0
    %359 = vmatpush1.bf16.msra.mxu0 0
    %360 = vmatprep.subr.bf16.mxu0 0
    %361 = vmatpush1.bf16.msra.mxu0 0
    %362 = vmatprep.subr.bf16.mxu0 0
    %363 = vmatpush1.bf16.msra.mxu0 0
    %364 = vmatprep.subr.bf16.mxu0 0
    %365 = vmatpush1.bf16.msra.mxu0 0
    %366 = vmatprep.subr.bf16.mxu0 0
    %367 = vmatpush1.bf16.msra.mxu0 0
    %368 = vmatprep.subr.bf16.mxu0 0
    %369 = vmatpush1.bf16.msra.mxu0 0
    %370 = vmatprep.mubr.bf16.mxu0 0
    %371 = vmatmul.mubr.bf16.gmra.mrb[0].mxu0 %v176
    %v372 = vpop.f32.mrb[0].mxu0
    %v373 = vadd.f32 0.0, %v372
    %v374 = vpop.f32.mrb[0].mxu0
    %v375 = vadd.f32 0.0, %v374
    %v376 = vpop.f32.mrb[0].mxu0
    %v377 = vadd.f32 0.0, %v376
    %v378 = vpop.f32.mrb[0].mxu0
    %v379 = vadd.f32 0.0, %v378
    %380 = vdwg.mxu0
    %381 = vmatprep.subr.bf16.mxu0 %v277
    %382 = vmatpush1.bf16.msra.mxu0 %v276
    %383 = vmatprep.subr.bf16.mxu0 %v281
    %384 = vmatpush1.bf16.msra.mxu0 %v280
    %385 = vmatprep.subr.bf16.mxu0 %v285
    %386 = vmatpush1.bf16.msra.mxu0 %v284
    %387 = vmatprep.subr.bf16.mxu0 %v289
    %388 = vmatpush1.bf16.msra.mxu0 %v288
    %389 = vmatprep.subr.bf16.mxu0 %v293
    %390 = vmatpush1.bf16.msra.mxu0 %v292
    %391 = vmatprep.subr.bf16.mxu0 %v297
    %392 = vmatpush1.bf16.msra.mxu0 %v296
    %393 = vmatprep.subr.bf16.mxu0 %v301
    %394 = vmatpush1.bf16.msra.mxu0 %v300
    %395 = vmatprep.subr.bf16.mxu0 %v305
    %396 = vmatpush1.bf16.msra.mxu0 %v304
    %397 = vmatprep.subr.bf16.mxu0 0
    %398 = vmatpush1.bf16.msra.mxu0 0
    %399 = vmatprep.subr.bf16.mxu0 0
    %400 = vmatpush1.bf16.msra.mxu0 0
    %401 = vmatprep.subr.bf16.mxu0 0
    %402 = vmatpush1.bf16.msra.mxu0 0
    %403 = vmatprep.subr.bf16.mxu0 0
    %404 = vmatpush1.bf16.msra.mxu0 0
    %405 = vmatprep.subr.bf16.mxu0 0
    %406 = vmatpush1.bf16.msra.mxu0 0
    %407 = vmatprep.subr.bf16.mxu0 0
    %408 = vmatpush1.bf16.msra.mxu0 0
    %409 = vmatprep.subr.bf16.mxu0 0
    %410 = vmatpush1.bf16.msra.mxu0 0
    %411 = vmatprep.subr.bf16.mxu0 0
    %412 = vmatpush1.bf16.msra.mxu0 0
    %413 = vmatprep.mubr.bf16.mxu0 0
    %414 = vmatmul.mubr.bf16.gmra.mrb[0].mxu0 %v176
    %v415 = vpop.f32.mrb[0].mxu0
    %v416 = vadd.f32 0.0, %v415
    %v417 = vpop.f32.mrb[0].mxu0
    %v418 = vadd.f32 0.0, %v417
    %v419 = vpop.f32.mrb[0].mxu0
    %v420 = vadd.f32 0.0, %v419
    %v421 = vpop.f32.mrb[0].mxu0
    %v422 = vadd.f32 0.0, %v421
    %423 = vdwg.mxu0
    %v440 = vunpack.c.l.b16 %v124
    %v441 = vunpack.c.h.b16 %v124
    %v442 = vunpack.c.l.b16 %v125
    %v443 = vunpack.c.h.b16 %v125
    %v444 = vunpack.c.l.b16 %v126
    %v445 = vunpack.c.h.b16 %v126
    %v446 = vunpack.c.l.b16 %v127
    %v447 = vunpack.c.h.b16 %v127
    %v448 = vunpack.c.l.b16 %v128
    %v449 = vunpack.c.h.b16 %v128
    %v450 = vunpack.c.l.b16 %v129
    %v451 = vunpack.c.h.b16 %v129
    %v452 = vunpack.c.l.b16 %v130
    %v453 = vunpack.c.h.b16 %v130
    %v454 = vunpack.c.l.b16 %v131
    %v455 = vunpack.c.h.b16 %v131
    %v456 = vunpack.c.l.b16 %v132
    %v457 = vunpack.c.h.b16 %v132
    %v458 = vunpack.c.l.b16 %v133
    %v459 = vunpack.c.h.b16 %v133
    %v460 = vunpack.c.l.b16 %v134
    %v461 = vunpack.c.h.b16 %v134
    %v462 = vunpack.c.l.b16 %v135
    %v463 = vunpack.c.h.b16 %v135
    %v464 = vunpack.c.l.b16 %v136
    %v465 = vunpack.c.h.b16 %v136
    %v466 = vunpack.c.l.b16 %v137
    %v467 = vunpack.c.h.b16 %v137
    %v468 = vunpack.c.l.b16 %v138
    %v469 = vunpack.c.h.b16 %v138
    %v470 = vunpack.c.l.b16 %v139
    %v471 = vunpack.c.h.b16 %v139
    %v472 = vpack.c.b16 %v444, %v440
    %v473 = vpack.c.b16 %v445, %v441
    %v474 = vpack.c.b16 %v446, %v442
    %v475 = vpack.c.b16 %v447, %v443
    %v476 = vpack.c.b16 %v452, %v448
    %v477 = vpack.c.b16 %v453, %v449
    %v478 = vpack.c.b16 %v454, %v450
    %v479 = vpack.c.b16 %v455, %v451
    %v480 = vpack.c.b16 %v460, %v456
    %v481 = vpack.c.b16 %v461, %v457
    %v482 = vpack.c.b16 %v462, %v458
    %v483 = vpack.c.b16 %v463, %v459
    %v484 = vpack.c.b16 %v468, %v464
    %v485 = vpack.c.b16 %v469, %v465
    %v486 = vpack.c.b16 %v470, %v466
    %v487 = vpack.c.b16 %v471, %v467
    %vm504 = vcmask 523264
    %v506 = vsel %vm504, %v123, 0
    %508 = vmatprep.subr.bf16.mxu0 %v473
    %509 = vmatpush1.bf16.msra.mxu0 %v472
    %510 = vmatprep.subr.bf16.mxu0 %v477
    %511 = vmatpush1.bf16.msra.mxu0 %v476
    %512 = vmatprep.subr.bf16.mxu0 %v481
    %513 = vmatpush1.bf16.msra.mxu0 %v480
    %514 = vmatprep.subr.bf16.mxu0 %v485
    %515 = vmatpush1.bf16.msra.mxu0 %v484
    %516 = vmatprep.subr.bf16.mxu0 0
    %517 = vmatpush1.bf16.msra.mxu0 0
    %518 = vmatprep.subr.bf16.mxu0 0
    %519 = vmatpush1.bf16.msra.mxu0 0
    %520 = vmatprep.subr.bf16.mxu0 0
    %521 = vmatpush1.bf16.msra.mxu0 0
    %522 = vmatprep.subr.bf16.mxu0 0
    %523 = vmatpush1.bf16.msra.mxu0 0
    %524 = vmatprep.subr.bf16.mxu0 0
    %525 = vmatpush1.bf16.msra.mxu0 0
    %526 = vmatprep.subr.bf16.mxu0 0
    %527 = vmatpush1.bf16.msra.mxu0 0
    %528 = vmatprep.subr.bf16.mxu0 0
    %529 = vmatpush1.bf16.msra.mxu0 0
    %530 = vmatprep.subr.bf16.mxu0 0
    %531 = vmatpush1.bf16.msra.mxu0 0
    %532 = vmatprep.subr.bf16.mxu0 0
    %533 = vmatpush1.bf16.msra.mxu0 0
    %534 = vmatprep.subr.bf16.mxu0 0
    %535 = vmatpush1.bf16.msra.mxu0 0
    %536 = vmatprep.subr.bf16.mxu0 0
    %537 = vmatpush1.bf16.msra.mxu0 0
    %538 = vmatprep.subr.bf16.mxu0 0
    %539 = vmatpush1.bf16.msra.mxu0 0
    %540 = vmatprep.mubr.bf16.mxu0 0
    %541 = vmatmul.mubr.bf16.gmra.mrb[0].mxu0 %v506
    %v542 = vpop.f32.mrb[0].mxu0
    %v543 = vadd.f32 %v373, %v542
    %v544 = vpop.f32.mrb[0].mxu0
    %v545 = vadd.f32 %v375, %v544
    %v546 = vpop.f32.mrb[0].mxu0
    %v547 = vadd.f32 %v377, %v546
    %v548 = vpop.f32.mrb[0].mxu0
    %v549 = vadd.f32 %v379, %v548
    %550 = vdwg.mxu0
    %551 = vmatprep.subr.bf16.mxu0 %v475
    %552 = vmatpush1.bf16.msra.mxu0 %v474
    %553 = vmatprep.subr.bf16.mxu0 %v479
    %554 = vmatpush1.bf16.msra.mxu0 %v478
    %555 = vmatprep.subr.bf16.mxu0 %v483
    %556 = vmatpush1.bf16.msra.mxu0 %v482
    %557 = vmatprep.subr.bf16.mxu0 %v487
    %558 = vmatpush1.bf16.msra.mxu0 %v486
    %559 = vmatprep.subr.bf16.mxu0 0
    %560 = vmatpush1.bf16.msra.mxu0 0
    %561 = vmatprep.subr.bf16.mxu0 0
    %562 = vmatpush1.bf16.msra.mxu0 0
    %563 = vmatprep.subr.bf16.mxu0 0
    %564 = vmatpush1.bf16.msra.mxu0 0
    %565 = vmatprep.subr.bf16.mxu0 0
    %566 = vmatpush1.bf16.msra.mxu0 0
    %567 = vmatprep.subr.bf16.mxu0 0
    %568 = vmatpush1.bf16.msra.mxu0 0
    %569 = vmatprep.subr.bf16.mxu0 0
    %570 = vmatpush1.bf16.msra.mxu0 0
    %571 = vmatprep.subr.bf16.mxu0 0
    %572 = vmatpush1.bf16.msra.mxu0 0
    %573 = vmatprep.subr.bf16.mxu0 0
    %574 = vmatpush1.bf16.msra.mxu0 0
    %575 = vmatprep.subr.bf16.mxu0 0
    %576 = vmatpush1.bf16.msra.mxu0 0
    %577 = vmatprep.subr.bf16.mxu0 0
    %578 = vmatpush1.bf16.msra.mxu0 0
    %579 = vmatprep.subr.bf16.mxu0 0
    %580 = vmatpush1.bf16.msra.mxu0 0
    %581 = vmatprep.subr.bf16.mxu0 0
    %582 = vmatpush1.bf16.msra.mxu0 0
    %583 = vmatprep.mubr.bf16.mxu0 0
    %584 = vmatmul.mubr.bf16.gmra.mrb[0].mxu0 %v506
    %v585 = vpop.f32.mrb[0].mxu0
    %v586 = vadd.f32 %v416, %v585
    %v587 = vpop.f32.mrb[0].mxu0
    %v588 = vadd.f32 %v418, %v587
    %v589 = vpop.f32.mrb[0].mxu0
    %v590 = vadd.f32 %v420, %v589
    %v591 = vpop.f32.mrb[0].mxu0
    %v592 = vadd.f32 %v422, %v591
    %593 = vdwg.mxu0
    %v594 = vld [vmem:[%s7] sm:$0xf]
    %v596 = vlaneseq
    %v597 = vshrl.u32 %v596, 7
    %v598 = vsub.s32 0, %v597
    %v599 = vrot.slane %v594, %v598
    %v600 = vlaneseq
    %v601 = vshrl.u32 %v600, 7
    %v602 = vsub.s32 1, %v601
    %v603 = vrot.slane %v594, %v602
    %v604 = vlaneseq
    %v605 = vshrl.u32 %v604, 7
    %v606 = vsub.s32 2, %v605
    %v607 = vrot.slane %v594, %v606
    %v608 = vlaneseq
    %v609 = vshrl.u32 %v608, 7
    %v610 = vsub.s32 3, %v609
    %v611 = vrot.slane %v594, %v610
    %v616 = vadd.f32 %v543, %v599
    %v617 = vadd.f32 %v545, %v603
    %v618 = vadd.f32 %v586, %v607
    %v619 = vadd.f32 %v588, %v611
    %v620 = vadd.f32 %v547, %v599
    %v621 = vadd.f32 %v549, %v603
    %v622 = vadd.f32 %v590, %v607
    %v623 = vadd.f32 %v592, %v611
    %v624 = vxor.u32 %v616, 2147483648
    %v625 = vxor.u32 %v617, 2147483648
    %v626 = vxor.u32 %v618, 2147483648
    %v627 = vxor.u32 %v620, 2147483648
    %v628 = vxor.u32 %v621, 2147483648
    %v629 = vxor.u32 %v622, 2147483648
    %v630 = vmul.f32 %v624, 1.442695
    %v631 = vpow.pop %v630
    %v632 = vmul.f32 %v625, 1.442695
    %v633 = vpow.pop %v632
    %v634 = vmul.f32 %v626, 1.442695
    %v635 = vpow.pop %v634
    %v636 = vmul.f32 %v627, 1.442695
    %v637 = vpow.pop %v636
    %v638 = vmul.f32 %v628, 1.442695
    %v639 = vpow.pop %v638
    %v640 = vmul.f32 %v629, 1.442695
    %v641 = vpow.pop %v640
    %v642 = vadd.f32 %v631, 1.0
    %v643 = vadd.f32 %v633, 1.0
    %v644 = vadd.f32 %v635, 1.0
    %v645 = vadd.f32 %v637, 1.0
    %v646 = vadd.f32 %v639, 1.0
    %v647 = vadd.f32 %v641, 1.0
    %v648 = vrcp.pop %v642
    %v649 = vmul.f32 1.0, %v648
    %v650 = vrcp.pop %v643
    %v651 = vmul.f32 1.0, %v650
    %v652 = vrcp.pop %v644
    %v653 = vmul.f32 1.0, %v652
    %v654 = vrcp.pop %v645
    %v655 = vmul.f32 1.0, %v654
    %v656 = vrcp.pop %v646
    %v657 = vmul.f32 1.0, %v656
    %v658 = vrcp.pop %v647
    %v659 = vmul.f32 1.0, %v658
    %v660 = vtanh.pop %v619
    %v661 = vtanh.pop %v623
    %v662 = vmul.f32 %v651, %v77
    %v663 = vmul.f32 %v657, %v78
    %v664 = vmul.f32 %v649, %v660
    %v665 = vmul.f32 %v655, %v661
    %v666 = vadd.f32 %v662, %v664
    %v667 = vadd.f32 %v663, %v665
    %v668 = vtanh.pop %v666
    %v669 = vtanh.pop %v667
    %v670 = vmul.f32 %v653, %v668
    %v671 = vmul.f32 %v659, %v669
    %v672 = vpack.c.bf16 %v671, %v670
    %v674 = vunpack.c.l.b16 %v672
    %v675 = vunpack.c.h.b16 %v672
    %v676 = vpack.c.b16 %v674, %v674
    %v677 = vpack.c.b16 %v675, %v675
    %680 = vst [vmem:[#allocation8] sm:$0xf] %v676
    %681 = vst [vmem:[#allocation8 + $0x4] sm:$0xf] %v677
    %682 = vst [vmem:[#allocation9] sm:$0xff] %v666
    %683 = vst [vmem:[#allocation9 + $0x8] sm:$0xff] %v667
    // Predicated region
    $region46: #{tpu_custom_call.1} parent=1 // pred_check
      _
    $region47: #{tpu_custom_call.1} parent=1 // pred_check_branch
      %685 = sbr.rel (0) target = $region49
    $region48: #{tpu_custom_call.1} parent=1 // pred_region
      %s687 = ssub.s32 128, 128
      %688 = vsyncadd [#allocation4], %s687
      %s689 = sshll.u32 [#allocation8], 4
      %s690 = int_to_ptr.vmem [resolvable:$true] %s689
      %695 = dma.vmem_to_hbm [thread:$0]  %s690, 128, %s8, [#allocation4], 64, 64, 4
    $region49: #{tpu_custom_call.1} parent=1 // pred_fallthru
      _
    // Predicated region
    $region50: #{tpu_custom_call.1} parent=1 // pred_check
      _
    $region51: #{tpu_custom_call.1} parent=1 // pred_check_branch
      %697 = sbr.rel (0) target = $region53
    $region52: #{tpu_custom_call.1} parent=1 // pred_region
      %s699 = ssub.s32 256, 256
      %700 = vsyncadd [#allocation10], %s699
      %s701 = sshll.u32 [#allocation9], 4
      %s702 = int_to_ptr.vmem [resolvable:$true] %s701
      %707 = dma.vmem_to_hbm [thread:$0]  %s702, 256, %s9, [#allocation10], 128, 128, 8
    $region53: #{tpu_custom_call.1} parent=1 // pred_fallthru
      _
    // Predicated region
    $region54: #{tpu_custom_call.1} parent=1 // pred_check
      _
    $region55: #{tpu_custom_call.1} parent=1 // pred_check_branch
      %709 = sbr.rel (0) target = $region57
    $region56: #{tpu_custom_call.1} parent=1 // pred_region
      %710 = dma.done [#allocation4], 128
    $region57: #{tpu_custom_call.1} parent=1 // pred_fallthru
      _
    // Predicated region
    $region58: #{tpu_custom_call.1} parent=1 // pred_check
      _
    $region59: #{tpu_custom_call.1} parent=1 // pred_check_branch
      %712 = sbr.rel (0) target = $region61
    $region60: #{tpu_custom_call.1} parent=1 // pred_region
      %713 = dma.done [#allocation10], 256
    $region61: #{tpu_custom_call.1} parent=1 // pred_fallthru
      _
    %714 = vsyncpa [#allocation3], 1
    %715 = vsyncpa [#allocation6], 1
    %716 = vsyncpa [#allocation4], 1
    %717 = vsyncpa [#allocation10], 1

</llo_original>
